<compile_context>
chip_gen: v7x
topology: tpu7x:2x2x1
jax: 0.10.0
libtpu: 0.0.40
codegen_flags: <defaults>
</compile_context>

<pallas_src>
import functools

import numpy as np
import jax
import jax.numpy as jnp
from jax import lax
from jax.experimental import pallas as pl
from jax.experimental.pallas import tpu as pltpu

EPS = 1e-5  # torch.nn.BatchNorm2d default


# ----------------------------- Pallas kernel ------------------------------- #

def _recurrent_kernel(x_ref, w_ref, b_ref, gamma_ref, beta_ref, mask_ref,
                      o_ref, x1_ref, col_ref, *, C, M, W, pad):
    """One grid step = one (x [+ x1]) -> 3x3 conv -> BN(batch stats) -> ReLU."""
    step = pl.program_id(0)

    # x1 starts at zero so step 0 computes conv(x) exactly (no residual).
    @pl.when(step == 0)
    def _():
        x1_ref[...] = jnp.zeros_like(x1_ref)

    # Residual add ONCE per conv; x1's halo is kept zero so the stencil pad
    # region of xsum equals x's zero padding.
    xsum = x_ref[...] + x1_ref[...]                       # (C, Mp) f32

    # Build the (9*C, M) im2col scratch: each 3x3 tap is a static lane-shifted
    # window of xsum; image-boundary zero padding is a per-tap 0/1 mask folded
    # into the scratch write.  Writes are (8,128)-aligned f32 stores.
    for k in range(9):
        dh, dw = k // 3 - 1, k % 3 - 1
        s = pad + dh * W + dw                             # static lane offset
        patch = xsum[:, s:s + M]                          # (C, M) f32
        if dh != 0 or dw != 0:
            patch = patch * mask_ref[k:k + 1, :]          # zero-pad boundaries
        col_ref[k * C:(k + 1) * C, :] = patch

    # Single MXU contraction over K = 9*C (one bf16 cast per conv, f32 acc).
    acc = jnp.dot(w_ref[...], col_ref[...].astype(jnp.bfloat16),
                  preferred_element_type=jnp.float32)     # (C, M) f32
    acc = acc + b_ref[...]                                # conv bias

    # Training-mode BatchNorm2d over (N, H, W) per channel (biased variance).
    mean = jnp.mean(acc, axis=1, keepdims=True)           # (C, 1)
    cent = acc - mean
    var = jnp.mean(cent * cent, axis=1, keepdims=True)
    scale = gamma_ref[...] * lax.rsqrt(var + EPS)
    y = jnp.maximum(cent * scale + beta_ref[...], 0.0)    # ReLU, (C, M) f32

    # Carry x1 to the next conv in the padded layout.  `pad` is a multiple of
    # 128, so the interior write is lane-aligned; the halo stays zero.
    x1_ref[:, pad:pad + M] = y

    # Lane-dense output store (M multiple of 128 -> unmasked vst).  Constant
    # output block index => single HBM writeback after the last grid step.
    o_ref[...] = y


# ------------------------------ host-side glue ------------------------------ #

def _boundary_masks(N, H, W):
    """Per-tap 0/1 validity masks over the flattened pixel index, (9, N*H*W)."""
    m = np.arange(N * H * W)
    h = (m // W) % H
    w = m % W
    rows = []
    for kh in range(3):
        for kw in range(3):
            dh, dw = kh - 1, kw - 1
            rows.append((h + dh >= 0) & (h + dh < H) &
                        (w + dw >= 0) & (w + dw < W))
    return jnp.asarray(np.stack(rows).astype(np.float32))


def init_params(key, ch_out):
    kw_, kb_ = jax.random.split(key)
    fan_in = 9 * ch_out
    bound = (1.0 / fan_in) ** 0.5
    return {
        # Conv2d weight in PyTorch OIHW layout.
        "w": (2.0 / fan_in) ** 0.5
             * jax.random.normal(kw_, (ch_out, ch_out, 3, 3), jnp.float32),
        "b": jax.random.uniform(kb_, (ch_out,), jnp.float32, -bound, bound),
        "gamma": jnp.ones((ch_out,), jnp.float32),
        "beta": jnp.zeros((ch_out,), jnp.float32),
    }


def recurrent_block_forward(params, x, t=2):
    """x: (N, C, H, W) float32 (PyTorch NCHW).  Returns (N, C, H, W)."""
    N, C, H, W = x.shape
    M = N * H * W
    assert M % 128 == 0, "flattened pixel count must be lane-aligned for this demo"
    # TODO(synk): for real UNet sizes, tile the pixel (lane) axis on the grid with
    # per-tile partial BN sums + a cheap second normalize pass (mandatory on v7x's
    # 64 MiB VMEM; also enables 2-TC 'parallel' split and DMA/compute pipelining).
    pad = ((W + 1 + 127) // 128) * 128          # aligned stencil halo (>= W+1)
    Mp = M + 2 * pad

    # channels-on-sublanes / pixels-on-lanes layout, zero halo for the stencil.
    xt = jnp.transpose(x, (1, 0, 2, 3)).reshape(C, M)
    x_pad = jnp.pad(xt, ((0, 0), (pad, pad)))

    # Conv weight OIHW -> (Cout, 9*Cin), K index = k*Cin + ci with k = kh*3 + kw.
    w72 = (jnp.transpose(params["w"], (0, 2, 3, 1))
           .reshape(C, 9 * C).astype(jnp.bfloat16))
    b = params["b"].reshape(C, 1).astype(jnp.float32)
    gamma = params["gamma"].reshape(C, 1).astype(jnp.float32)
    beta = params["beta"].reshape(C, 1).astype(jnp.float32)
    masks = _boundary_masks(N, H, W)

    kern = functools.partial(_recurrent_kernel, C=C, M=M, W=W, pad=pad)
    out = pl.pallas_call(
        kern,
        out_shape=jax.ShapeDtypeStruct((C, M), jnp.float32),
        grid=(t + 1,),                                   # conv(x), then t residual convs
        in_specs=[
            pl.BlockSpec((C, Mp), lambda i: (0, 0)),     # x (padded layout, f32)
            pl.BlockSpec((C, 9 * C), lambda i: (0, 0)),  # conv weights (bf16)
            pl.BlockSpec((C, 1), lambda i: (0, 0)),      # conv bias
            pl.BlockSpec((C, 1), lambda i: (0, 0)),      # BN gamma
            pl.BlockSpec((C, 1), lambda i: (0, 0)),      # BN beta
            pl.BlockSpec((9, M), lambda i: (0, 0)),      # boundary masks (f32)
        ],
        out_specs=pl.BlockSpec((C, M), lambda i: (0, 0)),
        scratch_shapes=[
            pltpu.VMEM((C, Mp), jnp.float32),            # x1, carried across steps
            pltpu.VMEM((9 * C, M), jnp.float32),         # im2col scratch
        ],
        compiler_params=pltpu.CompilerParams(
            dimension_semantics=("arbitrary",)),         # sequential recurrence
    )(x_pad, w72, b, gamma, beta, masks)

    return jnp.transpose(out.reshape(C, N, H, W), (1, 0, 2, 3))


# ------------------------- pure-JAX reference (check) ----------------------- #

def _reference_forward(params, x, t=2):
    def conv_bn_relu(inp):
        z = lax.conv_general_dilated(
            inp, params["w"], window_strides=(1, 1), padding="SAME",
            dimension_numbers=("NCHW", "OIHW", "NCHW"))
        z = z + params["b"][None, :, None, None]
        mean = jnp.mean(z, axis=(0, 2, 3), keepdims=True)
        var = jnp.mean((z - mean) ** 2, axis=(0, 2, 3), keepdims=True)
        z = (z - mean) * lax.rsqrt(var + EPS)
        z = z * params["gamma"][None, :, None, None] + params["beta"][None, :, None, None]
        return jnp.maximum(z, 0.0)

    x1 = None
    for i in range(t):                                   # same structure as PyTorch
        if i == 0:
            x1 = conv_bn_relu(x)
        x1 = conv_bn_relu(x + x1)
    return x1


if __name__ == "__main__":
    N, C, H, W = 2, 8, 16, 16        # small shapes: batch=2, ch_out=8, 16x16
    key = jax.random.PRNGKey(0)
    kx, kp = jax.random.split(key)
    x = jax.random.normal(kx, (N, C, H, W), jnp.float32)
    params = init_params(kp, C)

    fwd = jax.jit(functools.partial(recurrent_block_forward, t=2))
    out = jax.block_until_ready(fwd(params, x))

    assert out.shape == (N, C, H, W), out.shape
    assert bool(jnp.all(jnp.isfinite(out)))
    assert bool(jnp.all(out >= 0.0))                     # ReLU output is non-negative

    ref = _reference_forward(params, x, t=2)
    max_err = float(jnp.max(jnp.abs(out - ref)))
    # bf16 MXU operands with f32 accumulation vs f32 reference -> small drift.
    assert max_err < 8e-2, f"max |kernel - reference| = {max_err}"

    print("KERNEL_OK")
</pallas_src>

<mosaic_0001>
module attributes {stable_mosaic.version = 11 : i64} {
  func.func @_recurrent_kernel(%arg0: i32, %arg1: memref<8x768xf32, #tpu.memory_space<vmem>>, %arg2: memref<8x72xbf16, #tpu.memory_space<vmem>>, %arg3: memref<8x1xf32, #tpu.memory_space<vmem>>, %arg4: memref<8x1xf32, #tpu.memory_space<vmem>>, %arg5: memref<8x1xf32, #tpu.memory_space<vmem>>, %arg6: memref<9x512xf32, #tpu.memory_space<vmem>>, %arg7: memref<8x512xf32, #tpu.memory_space<vmem>>, %arg8: memref<8x768xf32, #tpu.memory_space<vmem>>, %arg9: memref<72x512xf32, #tpu.memory_space<vmem>>) attributes {dimension_semantics = [#tpu.dimension_semantics<arbitrary>], iteration_bounds = array<i64: 3>, scalar_prefetch = 0 : i64, scratch_operands = 2 : i64, tpu.core_type = #tpu.core_type<tc>, window_params = [{pipeline_mode = #tpu.pipeline_mode<synchronous>, transform_indices = @transform_0, window_bounds = array<i64: 8, 768>}, {pipeline_mode = #tpu.pipeline_mode<synchronous>, transform_indices = @transform_1, window_bounds = array<i64: 8, 72>}, {pipeline_mode = #tpu.pipeline_mode<synchronous>, transform_indices = @transform_2, window_bounds = array<i64: 8, 1>}, {pipeline_mode = #tpu.pipeline_mode<synchronous>, transform_indices = @transform_3, window_bounds = array<i64: 8, 1>}, {pipeline_mode = #tpu.pipeline_mode<synchronous>, transform_indices = @transform_4, window_bounds = array<i64: 8, 1>}, {pipeline_mode = #tpu.pipeline_mode<synchronous>, transform_indices = @transform_5, window_bounds = array<i64: 9, 512>}, {pipeline_mode = #tpu.pipeline_mode<synchronous>, transform_indices = @transform_6, window_bounds = array<i64: 8, 512>}]} {
    %c0_i32 = arith.constant 0 : i32
    %0 = arith.cmpi eq, %arg0, %c0_i32 : i32
    %1 = arith.extui %0 : i1 to i32
    %c0_i32_0 = arith.constant 0 : i32
    %2 = arith.cmpi ne, %1, %c0_i32_0 : i32
    scf.if %2 {
      %cst_43 = arith.constant 0.000000e+00 : f32
      %80 = vector.broadcast %cst_43 : f32 to vector<8x768xf32>
      %c0_44 = arith.constant 0 : index
      %c0_45 = arith.constant 0 : index
      %81 = vector.load %arg8[%c0_44, %c0_45] : memref<8x768xf32, #tpu.memory_space<vmem>>, vector<8x768xf32>
      tpu.vector_store %arg8[%c0_44, %c0_45], %80 {strides = array<i32>} : memref<8x768xf32, #tpu.memory_space<vmem>>, vector<8x768xf32>,
    } else {
    }
    %c0 = arith.constant 0 : index
    %c0_1 = arith.constant 0 : index
    %3 = vector.load %arg1[%c0, %c0_1] : memref<8x768xf32, #tpu.memory_space<vmem>>, vector<8x768xf32>
    %c0_2 = arith.constant 0 : index
    %c0_3 = arith.constant 0 : index
    %4 = vector.load %arg8[%c0_2, %c0_3] : memref<8x768xf32, #tpu.memory_space<vmem>>, vector<8x768xf32>
    %5 = arith.addf %3, %4 : vector<8x768xf32>
    %6 = vector.extract_strided_slice %5 {offsets = [0, 111], sizes = [8, 512], strides = [1, 1]} : vector<8x768xf32> to vector<8x512xf32>
    %c0_4 = arith.constant 0 : index
    %c0_5 = arith.constant 0 : index
    %7 = vector.load %arg6[%c0_4, %c0_5] : memref<9x512xf32, #tpu.memory_space<vmem>>, vector<1x512xf32>
    %8 = vector.broadcast %7 : vector<1x512xf32> to vector<8x512xf32>
    %9 = arith.mulf %6, %8 : vector<8x512xf32>
    %c0_6 = arith.constant 0 : index
    %c0_7 = arith.constant 0 : index
    %10 = vector.load %arg9[%c0_6, %c0_7] : memref<72x512xf32, #tpu.memory_space<vmem>>, vector<8x512xf32>
    tpu.vector_store %arg9[%c0_6, %c0_7], %9 {strides = array<i32>} : memref<72x512xf32, #tpu.memory_space<vmem>>, vector<8x512xf32>,
    %11 = vector.extract_strided_slice %5 {offsets = [0, 112], sizes = [8, 512], strides = [1, 1]} : vector<8x768xf32> to vector<8x512xf32>
    %c1 = arith.constant 1 : index
    %c0_8 = arith.constant 0 : index
    %12 = vector.load %arg6[%c1, %c0_8] : memref<9x512xf32, #tpu.memory_space<vmem>>, vector<1x512xf32>
    %13 = vector.broadcast %12 : vector<1x512xf32> to vector<8x512xf32>
    %14 = arith.mulf %11, %13 : vector<8x512xf32>
    %c8 = arith.constant 8 : index
    %c0_9 = arith.constant 0 : index
    %15 = vector.load %arg9[%c8, %c0_9] : memref<72x512xf32, #tpu.memory_space<vmem>>, vector<8x512xf32>
    tpu.vector_store %arg9[%c8, %c0_9], %14 {strides = array<i32>} : memref<72x512xf32, #tpu.memory_space<vmem>>, vector<8x512xf32>,
    %16 = vector.extract_strided_slice %5 {offsets = [0, 113], sizes = [8, 512], strides = [1, 1]} : vector<8x768xf32> to vector<8x512xf32>
    %c2 = arith.constant 2 : index
    %c0_10 = arith.constant 0 : index
    %17 = vector.load %arg6[%c2, %c0_10] : memref<9x512xf32, #tpu.memory_space<vmem>>, vector<1x512xf32>
    %18 = vector.broadcast %17 : vector<1x512xf32> to vector<8x512xf32>
    %19 = arith.mulf %16, %18 : vector<8x512xf32>
    %c16 = arith.constant 16 : index
    %c0_11 = arith.constant 0 : index
    %20 = vector.load %arg9[%c16, %c0_11] : memref<72x512xf32, #tpu.memory_space<vmem>>, vector<8x512xf32>
    tpu.vector_store %arg9[%c16, %c0_11], %19 {strides = array<i32>} : memref<72x512xf32, #tpu.memory_space<vmem>>, vector<8x512xf32>,
    %21 = vector.extract_strided_slice %5 {offsets = [0, 127], sizes = [8, 512], strides = [1, 1]} : vector<8x768xf32> to vector<8x512xf32>
    %c3 = arith.constant 3 : index
    %c0_12 = arith.constant 0 : index
    %22 = vector.load %arg6[%c3, %c0_12] : memref<9x512xf32, #tpu.memory_space<vmem>>, vector<1x512xf32>
    %23 = vector.broadcast %22 : vector<1x512xf32> to vector<8x512xf32>
    %24 = arith.mulf %21, %23 : vector<8x512xf32>
    %c24 = arith.constant 24 : index
    %c0_13 = arith.constant 0 : index
    %25 = vector.load %arg9[%c24, %c0_13] : memref<72x512xf32, #tpu.memory_space<vmem>>, vector<8x512xf32>
    tpu.vector_store %arg9[%c24, %c0_13], %24 {strides = array<i32>} : memref<72x512xf32, #tpu.memory_space<vmem>>, vector<8x512xf32>,
    %26 = vector.extract_strided_slice %5 {offsets = [0, 128], sizes = [8, 512], strides = [1, 1]} : vector<8x768xf32> to vector<8x512xf32>
    %c32 = arith.constant 32 : index
    %c0_14 = arith.constant 0 : index
    %27 = vector.load %arg9[%c32, %c0_14] : memref<72x512xf32, #tpu.memory_space<vmem>>, vector<8x512xf32>
    tpu.vector_store %arg9[%c32, %c0_14], %26 {strides = array<i32>} : memref<72x512xf32, #tpu.memory_space<vmem>>, vector<8x512xf32>,
    %28 = vector.extract_strided_slice %5 {offsets = [0, 129], sizes = [8, 512], strides = [1, 1]} : vector<8x768xf32> to vector<8x512xf32>
    %c5 = arith.constant 5 : index
    %c0_15 = arith.constant 0 : index
    %29 = vector.load %arg6[%c5, %c0_15] : memref<9x512xf32, #tpu.memory_space<vmem>>, vector<1x512xf32>
    %30 = vector.broadcast %29 : vector<1x512xf32> to vector<8x512xf32>
    %31 = arith.mulf %28, %30 : vector<8x512xf32>
    %c40 = arith.constant 40 : index
    %c0_16 = arith.constant 0 : index
    %32 = vector.load %arg9[%c40, %c0_16] : memref<72x512xf32, #tpu.memory_space<vmem>>, vector<8x512xf32>
    tpu.vector_store %arg9[%c40, %c0_16], %31 {strides = array<i32>} : memref<72x512xf32, #tpu.memory_space<vmem>>, vector<8x512xf32>,
    %33 = vector.extract_strided_slice %5 {offsets = [0, 143], sizes = [8, 512], strides = [1, 1]} : vector<8x768xf32> to vector<8x512xf32>
    %c6 = arith.constant 6 : index
    %c0_17 = arith.constant 0 : index
    %34 = vector.load %arg6[%c6, %c0_17] : memref<9x512xf32, #tpu.memory_space<vmem>>, vector<1x512xf32>
    %35 = vector.broadcast %34 : vector<1x512xf32> to vector<8x512xf32>
    %36 = arith.mulf %33, %35 : vector<8x512xf32>
    %c48 = arith.constant 48 : index
    %c0_18 = arith.constant 0 : index
    %37 = vector.load %arg9[%c48, %c0_18] : memref<72x512xf32, #tpu.memory_space<vmem>>, vector<8x512xf32>
    tpu.vector_store %arg9[%c48, %c0_18], %36 {strides = array<i32>} : memref<72x512xf32, #tpu.memory_space<vmem>>, vector<8x512xf32>,
    %38 = vector.extract_strided_slice %5 {offsets = [0, 144], sizes = [8, 512], strides = [1, 1]} : vector<8x768xf32> to vector<8x512xf32>
    %c7 = arith.constant 7 : index
    %c0_19 = arith.constant 0 : index
    %39 = vector.load %arg6[%c7, %c0_19] : memref<9x512xf32, #tpu.memory_space<vmem>>, vector<1x512xf32>
    %40 = vector.broadcast %39 : vector<1x512xf32> to vector<8x512xf32>
    %41 = arith.mulf %38, %40 : vector<8x512xf32>
    %c56 = arith.constant 56 : index
    %c0_20 = arith.constant 0 : index
    %42 = vector.load %arg9[%c56, %c0_20] : memref<72x512xf32, #tpu.memory_space<vmem>>, vector<8x512xf32>
    tpu.vector_store %arg9[%c56, %c0_20], %41 {strides = array<i32>} : memref<72x512xf32, #tpu.memory_space<vmem>>, vector<8x512xf32>,
    %43 = vector.extract_strided_slice %5 {offsets = [0, 145], sizes = [8, 512], strides = [1, 1]} : vector<8x768xf32> to vector<8x512xf32>
    %c8_21 = arith.constant 8 : index
    %c0_22 = arith.constant 0 : index
    %44 = vector.load %arg6[%c8_21, %c0_22] : memref<9x512xf32, #tpu.memory_space<vmem>>, vector<1x512xf32>
    %45 = vector.broadcast %44 : vector<1x512xf32> to vector<8x512xf32>
    %46 = arith.mulf %43, %45 : vector<8x512xf32>
    %c64 = arith.constant 64 : index
    %c0_23 = arith.constant 0 : index
    %47 = vector.load %arg9[%c64, %c0_23] : memref<72x512xf32, #tpu.memory_space<vmem>>, vector<8x512xf32>
    tpu.vector_store %arg9[%c64, %c0_23], %46 {strides = array<i32>} : memref<72x512xf32, #tpu.memory_space<vmem>>, vector<8x512xf32>,
    %c0_24 = arith.constant 0 : index
    %c0_25 = arith.constant 0 : index
    %48 = vector.load %arg2[%c0_24, %c0_25] : memref<8x72xbf16, #tpu.memory_space<vmem>>, vector<8x72xbf16>
    %c0_26 = arith.constant 0 : index
    %c0_27 = arith.constant 0 : index
    %49 = vector.load %arg9[%c0_26, %c0_27] : memref<72x512xf32, #tpu.memory_space<vmem>>, vector<72x512xf32>
    %50 = arith.truncf %49 : vector<72x512xf32> to vector<72x512xbf16>
    %cst = arith.constant dense<0.000000e+00> : vector<8x512xf32>
    %51 = tpu.matmul %48, %50, %cst {dimension_numbers = #tpu.dot_dimension_numbers<[1], [0], [0], [1], [0, 0, 1, 1], [], []>} : vector<8x72xbf16>, vector<72x512xbf16>, vector<8x512xf32> -> vector<8x512xf32>
    %c0_28 = arith.constant 0 : index
    %c0_29 = arith.constant 0 : index
    %52 = vector.load %arg3[%c0_28, %c0_29] : memref<8x1xf32, #tpu.memory_space<vmem>>, vector<8x1xf32>
    %53 = vector.broadcast %52 : vector<8x1xf32> to vector<8x512xf32>
    %54 = arith.addf %51, %53 : vector<8x512xf32>
    %cst_30 = arith.constant dense<0.000000e+00> : vector<8xf32>
    %55 = vector.multi_reduction <add>, %54, %cst_30 [1] : vector<8x512xf32> to vector<8xf32>
    %56 = vector.shape_cast %55 : vector<8xf32> to vector<8x1xf32>
    %cst_31 = arith.constant 5.120000e+02 : f32
    %57 = vector.broadcast %cst_31 : f32 to vector<8x1xf32>
    %58 = arith.divf %56, %57 : vector<8x1xf32>
    %59 = vector.broadcast %58 : vector<8x1xf32> to vector<8x512xf32>
    %60 = arith.subf %54, %59 : vector<8x512xf32>
    %61 = arith.mulf %60, %60 : vector<8x512xf32>
    %cst_32 = arith.constant dense<0.000000e+00> : vector<8xf32>
    %62 = vector.multi_reduction <add>, %61, %cst_32 [1] : vector<8x512xf32> to vector<8xf32>
    %63 = vector.shape_cast %62 : vector<8xf32> to vector<8x1xf32>
    %cst_33 = arith.constant 5.120000e+02 : f32
    %64 = vector.broadcast %cst_33 : f32 to vector<8x1xf32>
    %65 = arith.divf %63, %64 : vector<8x1xf32>
    %c0_34 = arith.constant 0 : index
    %c0_35 = arith.constant 0 : index
    %66 = vector.load %arg4[%c0_34, %c0_35] : memref<8x1xf32, #tpu.memory_space<vmem>>, vector<8x1xf32>
    %cst_36 = arith.constant 9.99999974E-6 : f32
    %67 = vector.broadcast %cst_36 : f32 to vector<8x1xf32>
    %68 = arith.addf %65, %67 : vector<8x1xf32>
    %69 = math.rsqrt %68 : vector<8x1xf32>
    %70 = arith.mulf %66, %69 : vector<8x1xf32>
    %71 = vector.broadcast %70 : vector<8x1xf32> to vector<8x512xf32>
    %72 = arith.mulf %60, %71 : vector<8x512xf32>
    %c0_37 = arith.constant 0 : index
    %c0_38 = arith.constant 0 : index
    %73 = vector.load %arg5[%c0_37, %c0_38] : memref<8x1xf32, #tpu.memory_space<vmem>>, vector<8x1xf32>
    %74 = vector.broadcast %73 : vector<8x1xf32> to vector<8x512xf32>
    %75 = arith.addf %72, %74 : vector<8x512xf32>
    %cst_39 = arith.constant 0.000000e+00 : f32
    %76 = vector.broadcast %cst_39 : f32 to vector<8x512xf32>
    %77 = arith.maximumf %75, %76 : vector<8x512xf32>
    %c0_40 = arith.constant 0 : index
    %c128 = arith.constant 128 : index
    %78 = vector.load %arg8[%c0_40, %c128] : memref<8x768xf32, #tpu.memory_space<vmem>>, vector<8x512xf32>
    tpu.vector_store %arg8[%c0_40, %c128], %77 {strides = array<i32>} : memref<8x768xf32, #tpu.memory_space<vmem>>, vector<8x512xf32>,
    %c0_41 = arith.constant 0 : index
    %c0_42 = arith.constant 0 : index
    %79 = vector.load %arg7[%c0_41, %c0_42] : memref<8x512xf32, #tpu.memory_space<vmem>>, vector<8x512xf32>
    tpu.vector_store %arg7[%c0_41, %c0_42], %77 {strides = array<i32>} : memref<8x512xf32, #tpu.memory_space<vmem>>, vector<8x512xf32>,
    return
  }
  func.func @transform_0(%arg0: i32) -> (i32, i32) {
    %c0_i32 = arith.constant 0 : i32
    %c0_i32_0 = arith.constant 0 : i32
    %c0_i32_1 = arith.constant 0 : i32
    return %c0_i32, %c0_i32_0 : i32, i32
  }
  func.func @transform_1(%arg0: i32) -> (i32, i32) {
    %c0_i32 = arith.constant 0 : i32
    %c0_i32_0 = arith.constant 0 : i32
    %c0_i32_1 = arith.constant 0 : i32
    return %c0_i32, %c0_i32_0 : i32, i32
  }
  func.func @transform_2(%arg0: i32) -> (i32, i32) {
    %c0_i32 = arith.constant 0 : i32
    %c0_i32_0 = arith.constant 0 : i32
    %c0_i32_1 = arith.constant 0 : i32
    return %c0_i32, %c0_i32_0 : i32, i32
  }
  func.func @transform_3(%arg0: i32) -> (i32, i32) {
    %c0_i32 = arith.constant 0 : i32
    %c0_i32_0 = arith.constant 0 : i32
    %c0_i32_1 = arith.constant 0 : i32
    return %c0_i32, %c0_i32_0 : i32, i32
  }
  func.func @transform_4(%arg0: i32) -> (i32, i32) {
    %c0_i32 = arith.constant 0 : i32
    %c0_i32_0 = arith.constant 0 : i32
    %c0_i32_1 = arith.constant 0 : i32
    return %c0_i32, %c0_i32_0 : i32, i32
  }
  func.func @transform_5(%arg0: i32) -> (i32, i32) {
    %c0_i32 = arith.constant 0 : i32
    %c0_i32_0 = arith.constant 0 : i32
    %c0_i32_1 = arith.constant 0 : i32
    return %c0_i32, %c0_i32_0 : i32, i32
  }
  func.func @transform_6(%arg0: i32) -> (i32, i32) {
    %c0_i32 = arith.constant 0 : i32
    %c0_i32_0 = arith.constant 0 : i32
    %c0_i32_1 = arith.constant 0 : i32
    return %c0_i32, %c0_i32_0 : i32, i32
  }
}

</mosaic_0001>

<llo_original>
// kernel: recurrent_block_forward.1
$region0: #{recurrent_block_forward.1}
  #allocation0 [shape = 'u32[]', space=smem, size = 0x4, offset = 0x4, fixed_abs, tag = 'smem constant byte address 0x4 - core index']
  #allocation1 [shape = 'u32[144,128]{1,0:T(1,128)}', space=vmem, size = 0x12000, scoped, tag = 'internal scratch']
  #allocation2 [shape = 'f32[8,768]{1,0:T(8,128)}', space=vmem, size = 0x6000, scoped, tag = 'scratch operand']
  #allocation3 [shape = 'f32[72,512]{1,0:T(8,128)}', space=vmem, size = 0x24000, scoped, tag = 'scratch operand']
  %s0 = inlined_call_operand.vmem [shape: f32[8,768], index: 0, kind: input, shape index: {}]
  %s1 = inlined_call_operand.vmem [shape: bf16[8,72], index: 1, kind: input, shape index: {}]
  %s2 = inlined_call_operand.vmem [shape: f32[8,1], index: 2, kind: input, shape index: {}]
  %s3 = inlined_call_operand.vmem [shape: f32[8,1], index: 3, kind: input, shape index: {}]
  %s4 = inlined_call_operand.vmem [shape: f32[8,1], index: 4, kind: input, shape index: {}]
  %s5 = inlined_call_operand.vmem [shape: f32[9,512], index: 5, kind: input, shape index: {}]
  %s6 = inlined_call_operand.vmem [shape: f32[8,512], index: 6, kind: output, shape index: {}]
  %s7 = sld [smem:[#allocation0]]
  $region61: #{recurrent_block_forward.1} parent=0
    _
  %s9 = ssub.s32 1, %s7
  %s10 = scalar_select 0, %s9, %s7
  loop: start=0, step=1, limit=5
  $region2: #{recurrent_block_forward.1} parent=0 // loop_pre_header
    _
  $region3: #{recurrent_block_forward.1} parent=0 // loop_header
    %s12 = sphi 0, %s16
    %p13 = scmp.ge.s32.totalorder %s12, 5
    %s20 = sphi 0, %s20
    %s22 = sphi 0, %s20
    %s23 = sphi 0, %s22
    %s37 = sphi 0, %s23
    %s41 = sphi 0, %s41
    %s43 = sphi 0, %s41
    %s44 = sphi 0, %s43
    %s58 = sphi 0, %s44
    %s62 = sphi 0, %s62
    %s64 = sphi 0, %s62
    %s65 = sphi 0, %s64
    %s79 = sphi 0, %s65
    %s83 = sphi 0, %s83
    %s85 = sphi 0, %s83
    %s86 = sphi 0, %s85
    %s100 = sphi 0, %s86
    %s104 = sphi 0, %s104
    %s106 = sphi 0, %s104
    %s107 = sphi 0, %s106
    %s121 = sphi 0, %s107
    %s125 = sphi 0, %s125
    %s127 = sphi 0, %s125
    %s128 = sphi 0, %s127
    %s142 = sphi 0, %s128
    %s146 = sphi 0, %s146
    %s148 = sphi 0, %s146
    %s149 = sphi 0, %s148
    %s163 = sphi 0, %s149
  $region4: #{recurrent_block_forward.1} parent=0 // loop_header_branch
    %15 = sbr.rel (%p13) target = $region8
  $region5: #{recurrent_block_forward.1} parent=0 // loop_body
    %s17 = ssub.s32 %s12, 1
    %s18 = ssub.s32 %s12, 2
    %s19 = sadd.s32 %s12, 1
    %s21 = sadd.s32 %s20, 1
    %p24 = scmp.eq.s32.totalorder %s12, 2
    %p25 = scmp.ne.s32.totalorder %s20, %s22
    %p26 = scmp.eq.s32.totalorder %s12, 0
    %p27 = por %p25, %p26
    %p28 = scmp.ne.s32.totalorder %s20, %s22
    %p29 = scmp.eq.s32.totalorder %s17, 2
    %p30 = por %p28, %p29
    %p31 = scmp.ne.s32.totalorder %s22, %s23
    %p32 = scmp.eq.s32.totalorder %s17, 0
    %p33 = por %p31, %p32
    %p34 = scmp.ne.s32.totalorder %s22, %s23
    %p35 = scmp.eq.s32.totalorder %s18, 2
    %p36 = por %p34, %p35
    %p38 = scmp.ne.s32.totalorder %s23, %s37
    %p39 = scmp.eq.s32.totalorder %s18, 0
    %p40 = por %p38, %p39
    %s42 = sadd.s32 %s41, 1
    %p45 = scmp.eq.s32.totalorder %s12, 2
    %p46 = scmp.ne.s32.totalorder %s41, %s43
    %p47 = scmp.eq.s32.totalorder %s12, 0
    %p48 = por %p46, %p47
    %p49 = scmp.ne.s32.totalorder %s41, %s43
    %p50 = scmp.eq.s32.totalorder %s17, 2
    %p51 = por %p49, %p50
    %p52 = scmp.ne.s32.totalorder %s43, %s44
    %p53 = scmp.eq.s32.totalorder %s17, 0
    %p54 = por %p52, %p53
    %p55 = scmp.ne.s32.totalorder %s43, %s44
    %p56 = scmp.eq.s32.totalorder %s18, 2
    %p57 = por %p55, %p56
    %p59 = scmp.ne.s32.totalorder %s44, %s58
    %p60 = scmp.eq.s32.totalorder %s18, 0
    %p61 = por %p59, %p60
    %s63 = sadd.s32 %s62, 1
    %p66 = scmp.eq.s32.totalorder %s12, 2
    %p67 = scmp.ne.s32.totalorder %s62, %s64
    %p68 = scmp.eq.s32.totalorder %s12, 0
    %p69 = por %p67, %p68
    %p70 = scmp.ne.s32.totalorder %s62, %s64
    %p71 = scmp.eq.s32.totalorder %s17, 2
    %p72 = por %p70, %p71
    %p73 = scmp.ne.s32.totalorder %s64, %s65
    %p74 = scmp.eq.s32.totalorder %s17, 0
    %p75 = por %p73, %p74
    %p76 = scmp.ne.s32.totalorder %s64, %s65
    %p77 = scmp.eq.s32.totalorder %s18, 2
    %p78 = por %p76, %p77
    %p80 = scmp.ne.s32.totalorder %s65, %s79
    %p81 = scmp.eq.s32.totalorder %s18, 0
    %p82 = por %p80, %p81
    %s84 = sadd.s32 %s83, 1
    %p87 = scmp.eq.s32.totalorder %s12, 2
    %p88 = scmp.ne.s32.totalorder %s83, %s85
    %p89 = scmp.eq.s32.totalorder %s12, 0
    %p90 = por %p88, %p89
    %p91 = scmp.ne.s32.totalorder %s83, %s85
    %p92 = scmp.eq.s32.totalorder %s17, 2
    %p93 = por %p91, %p92
    %p94 = scmp.ne.s32.totalorder %s85, %s86
    %p95 = scmp.eq.s32.totalorder %s17, 0
    %p96 = por %p94, %p95
    %p97 = scmp.ne.s32.totalorder %s85, %s86
    %p98 = scmp.eq.s32.totalorder %s18, 2
    %p99 = por %p97, %p98
    %p101 = scmp.ne.s32.totalorder %s86, %s100
    %p102 = scmp.eq.s32.totalorder %s18, 0
    %p103 = por %p101, %p102
    %s105 = sadd.s32 %s104, 1
    %p108 = scmp.eq.s32.totalorder %s12, 2
    %p109 = scmp.ne.s32.totalorder %s104, %s106
    %p110 = scmp.eq.s32.totalorder %s12, 0
    %p111 = por %p109, %p110
    %p112 = scmp.ne.s32.totalorder %s104, %s106
    %p113 = scmp.eq.s32.totalorder %s17, 2
    %p114 = por %p112, %p113
    %p115 = scmp.ne.s32.totalorder %s106, %s107
    %p116 = scmp.eq.s32.totalorder %s17, 0
    %p117 = por %p115, %p116
    %p118 = scmp.ne.s32.totalorder %s106, %s107
    %p119 = scmp.eq.s32.totalorder %s18, 2
    %p120 = por %p118, %p119
    %p122 = scmp.ne.s32.totalorder %s107, %s121
    %p123 = scmp.eq.s32.totalorder %s18, 0
    %p124 = por %p122, %p123
    %s126 = sadd.s32 %s125, 1
    %p129 = scmp.eq.s32.totalorder %s12, 2
    %p130 = scmp.ne.s32.totalorder %s125, %s127
    %p131 = scmp.eq.s32.totalorder %s12, 0
    %p132 = por %p130, %p131
    %p133 = scmp.ne.s32.totalorder %s125, %s127
    %p134 = scmp.eq.s32.totalorder %s17, 2
    %p135 = por %p133, %p134
    %p136 = scmp.ne.s32.totalorder %s127, %s128
    %p137 = scmp.eq.s32.totalorder %s17, 0
    %p138 = por %p136, %p137
    %p139 = scmp.ne.s32.totalorder %s127, %s128
    %p140 = scmp.eq.s32.totalorder %s18, 2
    %p141 = por %p139, %p140
    %p143 = scmp.ne.s32.totalorder %s128, %s142
    %p144 = scmp.eq.s32.totalorder %s18, 0
    %p145 = por %p143, %p144
    %s147 = sadd.s32 %s146, 1
    %p150 = scmp.eq.s32.totalorder %s12, 2
    %p151 = scmp.ne.s32.totalorder %s146, %s148
    %p152 = scmp.eq.s32.totalorder %s12, 0
    %p153 = por %p151, %p152
    %p154 = scmp.ne.s32.totalorder %s146, %s148
    %p155 = scmp.eq.s32.totalorder %s17, 2
    %p156 = por %p154, %p155
    %p157 = scmp.ne.s32.totalorder %s148, %s149
    %p158 = scmp.eq.s32.totalorder %s17, 0
    %p159 = por %p157, %p158
    %p160 = scmp.ne.s32.totalorder %s148, %s149
    %p161 = scmp.eq.s32.totalorder %s18, 2
    %p162 = por %p160, %p161
    %p164 = scmp.ne.s32.totalorder %s149, %s163
    %p165 = scmp.eq.s32.totalorder %s18, 0
    %p166 = por %p164, %p165
    %p167 = scmp.le.s32.totalorder 1, %s12
    %p168 = scmp.lt.s32.totalorder %s12, 4
    %p169 = pnand %p167, %p168
    %p170 = pneg %p169
    // Predicated region
    $region9: #{recurrent_block_forward.1} parent=5 // pred_check
      _
    $region10: #{recurrent_block_forward.1} parent=5 // pred_check_branch
      %172 = sbr.rel (%p169) target = $region12
    $region11: #{recurrent_block_forward.1} parent=5 // pred_region
      %s173 = ssub.s32 %s12, 1
      // Predicated region
      $region13: #{recurrent_block_forward.1} parent=11 // pred_check
        %p174 = pneg %p33
      $region14: #{recurrent_block_forward.1} parent=11 // pred_check_branch
        %176 = sbr.rel (%p174) target = $region16
      $region15: #{recurrent_block_forward.1} parent=11 // pred_region
        _
      $region16: #{recurrent_block_forward.1} parent=11 // pred_fallthru
        _
      // Predicated region
      $region17: #{recurrent_block_forward.1} parent=11 // pred_check
        %p177 = pneg %p54
      $region18: #{recurrent_block_forward.1} parent=11 // pred_check_branch
        %179 = sbr.rel (%p177) target = $region20
      $region19: #{recurrent_block_forward.1} parent=11 // pred_region
        _
      $region20: #{recurrent_block_forward.1} parent=11 // pred_fallthru
        _
      // Predicated region
      $region21: #{recurrent_block_forward.1} parent=11 // pred_check
        %p180 = pneg %p75
      $region22: #{recurrent_block_forward.1} parent=11 // pred_check_branch
        %182 = sbr.rel (%p180) target = $region24
      $region23: #{recurrent_block_forward.1} parent=11 // pred_region
        _
      $region24: #{recurrent_block_forward.1} parent=11 // pred_fallthru
        _
      // Predicated region
      $region25: #{recurrent_block_forward.1} parent=11 // pred_check
        %p183 = pneg %p96
      $region26: #{recurrent_block_forward.1} parent=11 // pred_check_branch
        %185 = sbr.rel (%p183) target = $region28
      $region27: #{recurrent_block_forward.1} parent=11 // pred_region
        _
      $region28: #{recurrent_block_forward.1} parent=11 // pred_fallthru
        _
      // Predicated region
      $region29: #{recurrent_block_forward.1} parent=11 // pred_check
        %p186 = pneg %p117
      $region30: #{recurrent_block_forward.1} parent=11 // pred_check_branch
        %188 = sbr.rel (%p186) target = $region32
      $region31: #{recurrent_block_forward.1} parent=11 // pred_region
        _
      $region32: #{recurrent_block_forward.1} parent=11 // pred_fallthru
        _
      // Predicated region
      $region33: #{recurrent_block_forward.1} parent=11 // pred_check
        %p189 = pneg %p138
      $region34: #{recurrent_block_forward.1} parent=11 // pred_check_branch
        %191 = sbr.rel (%p189) target = $region36
      $region35: #{recurrent_block_forward.1} parent=11 // pred_region
        _
      $region36: #{recurrent_block_forward.1} parent=11 // pred_fallthru
        _
    $region12: #{recurrent_block_forward.1} parent=5 // pred_fallthru
      _
    %p192 = scmp.lt.s32.totalorder %s12, 3
    // Predicated region
    $region37: #{recurrent_block_forward.1} parent=5 // pred_check
      %p193 = pneg %p192
    $region38: #{recurrent_block_forward.1} parent=5 // pred_check_branch
      %195 = sbr.rel (%p193) target = $region40
    $region39: #{recurrent_block_forward.1} parent=5 // pred_region
      _
    $region40: #{recurrent_block_forward.1} parent=5 // pred_fallthru
      _
    %p196 = scmp.le.s32.totalorder 1, %s12
    %p197 = scmp.lt.s32.totalorder %s12, 4
    %p198 = pnand %p196, %p197
    %p199 = pneg %p198
    // Predicated region
    $region41: #{recurrent_block_forward.1} parent=5 // pred_check
      _
    $region42: #{recurrent_block_forward.1} parent=5 // pred_check_branch
      %201 = sbr.rel (%p198) target = $region44
    $region43: #{recurrent_block_forward.1} parent=5 // pred_region
      %s202 = ssub.s32 %s12, 1
      %p203 = pneg %p33
      %p204 = pneg %p30
      %p205 = pneg %p54
      %p206 = pneg %p51
      %p207 = pneg %p75
      %p208 = pneg %p72
      %p209 = pneg %p96
      %p210 = pneg %p93
      %p211 = pneg %p117
      %p212 = pneg %p114
      %p213 = pneg %p138
      %p214 = pneg %p135
      %p215 = pneg %p159
      %p216 = pneg %p156
      %p218 = scmp.eq.s32.totalorder %s17, 0
      // Predicated region
      $region45: #{recurrent_block_forward.1} parent=43 // pred_check
        %p219 = pneg %p218
      $region46: #{recurrent_block_forward.1} parent=43 // pred_check_branch
        %221 = sbr.rel (%p219) target = $region48
      $region47: #{recurrent_block_forward.1} parent=43 // pred_region
        %222 = vst [vmem:[#allocation2] sm:$0xff] 0.0
        %223 = vst [vmem:[#allocation2 + $0x8] sm:$0xff] 0.0
        %224 = vst [vmem:[#allocation2 + $0x10] sm:$0xff] 0.0
        %225 = vst [vmem:[#allocation2 + $0x18] sm:$0xff] 0.0
        %226 = vst [vmem:[#allocation2 + $0x20] sm:$0xff] 0.0
        %227 = vst [vmem:[#allocation2 + $0x28] sm:$0xff] 0.0
      $region48: #{recurrent_block_forward.1} parent=43 // pred_fallthru
        _
      %v228 = vld [vmem:[%s0] sm:$0xff]
      %v229 = vld [vmem:[%s0 + $0x8] sm:$0xff]
      %v230 = vld [vmem:[%s0 + $0x10] sm:$0xff]
      %v231 = vld [vmem:[%s0 + $0x18] sm:$0xff]
      %v232 = vld [vmem:[%s0 + $0x20] sm:$0xff]
      %v233 = vld [vmem:[%s0 + $0x28] sm:$0xff]
      %v234 = vld [vmem:[#allocation2] sm:$0xff]
      %v235 = vld [vmem:[#allocation2 + $0x8] sm:$0xff]
      %v236 = vld [vmem:[#allocation2 + $0x10] sm:$0xff]
      %v237 = vld [vmem:[#allocation2 + $0x18] sm:$0xff]
      %v238 = vld [vmem:[#allocation2 + $0x20] sm:$0xff]
      %v239 = vld [vmem:[#allocation2 + $0x28] sm:$0xff]
      %v240 = vadd.f32 %v228, %v234
      %v241 = vadd.f32 %v229, %v235
      %v242 = vadd.f32 %v230, %v236
      %v243 = vadd.f32 %v231, %v237
      %v244 = vadd.f32 %v232, %v238
      %v245 = vadd.f32 %v233, %v239
      %v246 = vld [vmem:[%s5] ss:$8 sm:$0xf]
      %v248 = vlaneseq
      %v249 = vshrl.u32 %v248, 7
      %v250 = vsub.s32 0, %v249
      %v251 = vrot.slane %v246, %v250
      %v252 = vlaneseq
      %v253 = vshrl.u32 %v252, 7
      %v254 = vsub.s32 1, %v253
      %v255 = vrot.slane %v246, %v254
      %v256 = vlaneseq
      %v257 = vshrl.u32 %v256, 7
      %v258 = vsub.s32 2, %v257
      %v259 = vrot.slane %v246, %v258
      %v260 = vlaneseq
      %v261 = vshrl.u32 %v260, 7
      %v262 = vsub.s32 3, %v261
      %v263 = vrot.slane %v246, %v262
      %264 = vrot.lane.b32.xlu0 %v251, 111
      %v265 = vpop.permute.xlu0 %264
      %266 = vrot.lane.b32.xlu0 %v255, 111
      %v267 = vpop.permute.xlu0 %266
      %268 = vrot.lane.b32.xlu0 %v259, 111
      %v269 = vpop.permute.xlu0 %268
      %270 = vrot.lane.b32.xlu0 %v263, 111
      %v271 = vpop.permute.xlu0 %270
      %vm272 = vcmask 908288
      %v273 = vsel %vm272, %v265, %v267
      %v274 = vsel %vm272, %v267, %v269
      %v275 = vsel %vm272, %v269, %v271
      %v281 = vmul.f32 %v240, %v265
      %v282 = vmul.f32 %v241, %v273
      %v283 = vmul.f32 %v242, %v274
      %v284 = vmul.f32 %v243, %v275
      %v285 = vmul.f32 %v244, %v271
      %291 = vrot.lane.b32.xlu0 %v281, 17
      %v292 = vpop.permute.xlu0 %291
      %293 = vrot.lane.b32.xlu0 %v282, 17
      %v294 = vpop.permute.xlu0 %293
      %295 = vrot.lane.b32.xlu0 %v283, 17
      %v296 = vpop.permute.xlu0 %295
      %297 = vrot.lane.b32.xlu0 %v284, 17
      %v298 = vpop.permute.xlu0 %297
      %299 = vrot.lane.b32.xlu0 %v285, 17
      %v300 = vpop.permute.xlu0 %299
      %vm301 = vcmask 138240
      %v302 = vsel %vm301, %v292, %v294
      %v303 = vsel %vm301, %v294, %v296
      %v304 = vsel %vm301, %v296, %v298
      %v305 = vsel %vm301, %v298, %v300
      %310 = vst [vmem:[#allocation3] sm:$0xff] %v302
      %311 = vst [vmem:[#allocation3 + $0x8] sm:$0xff] %v303
      %312 = vst [vmem:[#allocation3 + $0x10] sm:$0xff] %v304
      %313 = vst [vmem:[#allocation3 + $0x18] sm:$0xff] %v305
      %s314 = scalar_lea.vmem %s5, 1
      %v315 = vld [vmem:[%s314] ss:$8 sm:$0xf]
      %v317 = vlaneseq
      %v318 = vshrl.u32 %v317, 7
      %v319 = vsub.s32 0, %v318
      %v320 = vrot.slane %v315, %v319
      %v321 = vlaneseq
      %v322 = vshrl.u32 %v321, 7
      %v323 = vsub.s32 1, %v322
      %v324 = vrot.slane %v315, %v323
      %v325 = vlaneseq
      %v326 = vshrl.u32 %v325, 7
      %v327 = vsub.s32 2, %v326
      %v328 = vrot.slane %v315, %v327
      %v329 = vlaneseq
      %v330 = vshrl.u32 %v329, 7
      %v331 = vsub.s32 3, %v330
      %v332 = vrot.slane %v315, %v331
      %333 = vrot.lane.b32.xlu0 %v320, 112
      %v334 = vpop.permute.xlu0 %333
      %335 = vrot.lane.b32.xlu0 %v324, 112
      %v336 = vpop.permute.xlu0 %335
      %337 = vrot.lane.b32.xlu0 %v328, 112
      %v338 = vpop.permute.xlu0 %337
      %339 = vrot.lane.b32.xlu0 %v332, 112
      %v340 = vpop.permute.xlu0 %339
      %vm341 = vcmask 916480
      %v342 = vsel %vm341, %v334, %v336
      %v343 = vsel %vm341, %v336, %v338
      %v344 = vsel %vm341, %v338, %v340
      %v350 = vmul.f32 %v240, %v334
      %v351 = vmul.f32 %v241, %v342
      %v352 = vmul.f32 %v242, %v343
      %v353 = vmul.f32 %v243, %v344
      %v354 = vmul.f32 %v244, %v340
      %360 = vrot.lane.b32.xlu0 %v350, 16
      %v361 = vpop.permute.xlu0 %360
      %362 = vrot.lane.b32.xlu0 %v351, 16
      %v363 = vpop.permute.xlu0 %362
      %364 = vrot.lane.b32.xlu0 %v352, 16
      %v365 = vpop.permute.xlu0 %364
      %366 = vrot.lane.b32.xlu0 %v353, 16
      %v367 = vpop.permute.xlu0 %366
      %368 = vrot.lane.b32.xlu0 %v354, 16
      %v369 = vpop.permute.xlu0 %368
      %vm370 = vcmask 130048
      %v371 = vsel %vm370, %v361, %v363
      %v372 = vsel %vm370, %v363, %v365
      %v373 = vsel %vm370, %v365, %v367
      %v374 = vsel %vm370, %v367, %v369
      %379 = vst [vmem:[#allocation3 + $0x20] sm:$0xff] %v371
      %380 = vst [vmem:[#allocation3 + $0x28] sm:$0xff] %v372
      %381 = vst [vmem:[#allocation3 + $0x30] sm:$0xff] %v373
      %382 = vst [vmem:[#allocation3 + $0x38] sm:$0xff] %v374
      %s383 = scalar_lea.vmem %s5, 2
      %v384 = vld [vmem:[%s383] ss:$8 sm:$0xf]
      %v386 = vlaneseq
      %v387 = vshrl.u32 %v386, 7
      %v388 = vsub.s32 0, %v387
      %v389 = vrot.slane %v384, %v388
      %v390 = vlaneseq
      %v391 = vshrl.u32 %v390, 7
      %v392 = vsub.s32 1, %v391
      %v393 = vrot.slane %v384, %v392
      %v394 = vlaneseq
      %v395 = vshrl.u32 %v394, 7
      %v396 = vsub.s32 2, %v395
      %v397 = vrot.slane %v384, %v396
      %v398 = vlaneseq
      %v399 = vshrl.u32 %v398, 7
      %v400 = vsub.s32 3, %v399
      %v401 = vrot.slane %v384, %v400
      %402 = vrot.lane.b32.xlu0 %v389, 113
      %v403 = vpop.permute.xlu0 %402
      %404 = vrot.lane.b32.xlu0 %v393, 113
      %v405 = vpop.permute.xlu0 %404
      %406 = vrot.lane.b32.xlu0 %v397, 113
      %v407 = vpop.permute.xlu0 %406
      %408 = vrot.lane.b32.xlu0 %v401, 113
      %v409 = vpop.permute.xlu0 %408
      %vm410 = vcmask 924672
      %v411 = vsel %vm410, %v403, %v405
      %v412 = vsel %vm410, %v405, %v407
      %v413 = vsel %vm410, %v407, %v409
      %v419 = vmul.f32 %v240, %v403
      %v420 = vmul.f32 %v241, %v411
      %v421 = vmul.f32 %v242, %v412
      %v422 = vmul.f32 %v243, %v413
      %v423 = vmul.f32 %v244, %v409
      %429 = vrot.lane.b32.xlu0 %v419, 15
      %v430 = vpop.permute.xlu0 %429
      %431 = vrot.lane.b32.xlu0 %v420, 15
      %v432 = vpop.permute.xlu0 %431
      %433 = vrot.lane.b32.xlu0 %v421, 15
      %v434 = vpop.permute.xlu0 %433
      %435 = vrot.lane.b32.xlu0 %v422, 15
      %v436 = vpop.permute.xlu0 %435
      %437 = vrot.lane.b32.xlu0 %v423, 15
      %v438 = vpop.permute.xlu0 %437
      %vm439 = vcmask 121856
      %v440 = vsel %vm439, %v430, %v432
      %v441 = vsel %vm439, %v432, %v434
      %v442 = vsel %vm439, %v434, %v436
      %v443 = vsel %vm439, %v436, %v438
      %448 = vst [vmem:[#allocation3 + $0x40] sm:$0xff] %v440
      %449 = vst [vmem:[#allocation3 + $0x48] sm:$0xff] %v441
      %450 = vst [vmem:[#allocation3 + $0x50] sm:$0xff] %v442
      %451 = vst [vmem:[#allocation3 + $0x58] sm:$0xff] %v443
      %s452 = scalar_lea.vmem %s5, 3
      %v453 = vld [vmem:[%s452] ss:$8 sm:$0xf]
      %v455 = vlaneseq
      %v456 = vshrl.u32 %v455, 7
      %v457 = vsub.s32 0, %v456
      %v458 = vrot.slane %v453, %v457
      %v459 = vlaneseq
      %v460 = vshrl.u32 %v459, 7
      %v461 = vsub.s32 1, %v460
      %v462 = vrot.slane %v453, %v461
      %v463 = vlaneseq
      %v464 = vshrl.u32 %v463, 7
      %v465 = vsub.s32 2, %v464
      %v466 = vrot.slane %v453, %v465
      %v467 = vlaneseq
      %v468 = vshrl.u32 %v467, 7
      %v469 = vsub.s32 3, %v468
      %v470 = vrot.slane %v453, %v469
      %471 = vrot.lane.b32.xlu0 %v458, 127
      %v472 = vpop.permute.xlu0 %471
      %473 = vrot.lane.b32.xlu0 %v462, 127
      %v474 = vpop.permute.xlu0 %473
      %475 = vrot.lane.b32.xlu0 %v466, 127
      %v476 = vpop.permute.xlu0 %475
      %477 = vrot.lane.b32.xlu0 %v470, 127
      %v478 = vpop.permute.xlu0 %477
      %vm479 = vcmask 1039360
      %v480 = vsel %vm479, %v472, %v474
      %v481 = vsel %vm479, %v474, %v476
      %v482 = vsel %vm479, %v476, %v478
      %v488 = vmul.f32 %v240, %v472
      %v489 = vmul.f32 %v241, %v480
      %v490 = vmul.f32 %v242, %v481
      %v491 = vmul.f32 %v243, %v482
      %v492 = vmul.f32 %v244, %v478
      %498 = vrot.lane.b32.xlu0 %v488, 1
      %v499 = vpop.permute.xlu0 %498
      %500 = vrot.lane.b32.xlu0 %v489, 1
      %v501 = vpop.permute.xlu0 %500
      %502 = vrot.lane.b32.xlu0 %v490, 1
      %v503 = vpop.permute.xlu0 %502
      %504 = vrot.lane.b32.xlu0 %v491, 1
      %v505 = vpop.permute.xlu0 %504
      %506 = vrot.lane.b32.xlu0 %v492, 1
      %v507 = vpop.permute.xlu0 %506
      %vm508 = vcmask 7168
      %v509 = vsel %vm508, %v499, %v501
      %v510 = vsel %vm508, %v501, %v503
      %v511 = vsel %vm508, %v503, %v505
      %v512 = vsel %vm508, %v505, %v507
      %517 = vst [vmem:[#allocation3 + $0x60] sm:$0xff] %v509
      %518 = vst [vmem:[#allocation3 + $0x68] sm:$0xff] %v510
      %519 = vst [vmem:[#allocation3 + $0x70] sm:$0xff] %v511
      %520 = vst [vmem:[#allocation3 + $0x78] sm:$0xff] %v512
      %521 = vst [vmem:[#allocation3 + $0x80] sm:$0xff] %v241
      %522 = vst [vmem:[#allocation3 + $0x88] sm:$0xff] %v242
      %523 = vst [vmem:[#allocation3 + $0x90] sm:$0xff] %v243
      %524 = vst [vmem:[#allocation3 + $0x98] sm:$0xff] %v244
      %s525 = scalar_lea.vmem %s5, 5
      %v526 = vld [vmem:[%s525] ss:$8 sm:$0xf]
      %v528 = vlaneseq
      %v529 = vshrl.u32 %v528, 7
      %v530 = vsub.s32 0, %v529
      %v531 = vrot.slane %v526, %v530
      %v532 = vlaneseq
      %v533 = vshrl.u32 %v532, 7
      %v534 = vsub.s32 1, %v533
      %v535 = vrot.slane %v526, %v534
      %v536 = vlaneseq
      %v537 = vshrl.u32 %v536, 7
      %v538 = vsub.s32 2, %v537
      %v539 = vrot.slane %v526, %v538
      %v540 = vlaneseq
      %v541 = vshrl.u32 %v540, 7
      %v542 = vsub.s32 3, %v541
      %v543 = vrot.slane %v526, %v542
      %544 = vrot.lane.b32.xlu0 %v531, 1
      %v545 = vpop.permute.xlu0 %544
      %546 = vrot.lane.b32.xlu0 %v535, 1
      %v547 = vpop.permute.xlu0 %546
      %548 = vrot.lane.b32.xlu0 %v539, 1
      %v549 = vpop.permute.xlu0 %548
      %550 = vrot.lane.b32.xlu0 %v543, 1
      %v551 = vpop.permute.xlu0 %550
      %v552 = vsel %vm508, %v545, %v547
      %v553 = vsel %vm508, %v547, %v549
      %v554 = vsel %vm508, %v549, %v551
      %v560 = vmul.f32 %v241, %v545
      %v561 = vmul.f32 %v242, %v552
      %v562 = vmul.f32 %v243, %v553
      %v563 = vmul.f32 %v244, %v554
      %v564 = vmul.f32 %v245, %v551
      %570 = vrot.lane.b32.xlu0 %v560, 127
      %v571 = vpop.permute.xlu0 %570
      %572 = vrot.lane.b32.xlu0 %v561, 127
      %v573 = vpop.permute.xlu0 %572
      %574 = vrot.lane.b32.xlu0 %v562, 127
      %v575 = vpop.permute.xlu0 %574
      %576 = vrot.lane.b32.xlu0 %v563, 127
      %v577 = vpop.permute.xlu0 %576
      %578 = vrot.lane.b32.xlu0 %v564, 127
      %v579 = vpop.permute.xlu0 %578
      %v580 = vsel %vm479, %v571, %v573
      %v581 = vsel %vm479, %v573, %v575
      %v582 = vsel %vm479, %v575, %v577
      %v583 = vsel %vm479, %v577, %v579
      %588 = vst [vmem:[#allocation3 + $0xa0] sm:$0xff] %v580
      %589 = vst [vmem:[#allocation3 + $0xa8] sm:$0xff] %v581
      %590 = vst [vmem:[#allocation3 + $0xb0] sm:$0xff] %v582
      %591 = vst [vmem:[#allocation3 + $0xb8] sm:$0xff] %v583
      %s592 = scalar_lea.vmem %s5, 6
      %v593 = vld [vmem:[%s592] ss:$8 sm:$0xf]
      %v595 = vlaneseq
      %v596 = vshrl.u32 %v595, 7
      %v597 = vsub.s32 0, %v596
      %v598 = vrot.slane %v593, %v597
      %v599 = vlaneseq
      %v600 = vshrl.u32 %v599, 7
      %v601 = vsub.s32 1, %v600
      %v602 = vrot.slane %v593, %v601
      %v603 = vlaneseq
      %v604 = vshrl.u32 %v603, 7
      %v605 = vsub.s32 2, %v604
      %v606 = vrot.slane %v593, %v605
      %v607 = vlaneseq
      %v608 = vshrl.u32 %v607, 7
      %v609 = vsub.s32 3, %v608
      %v610 = vrot.slane %v593, %v609
      %611 = vrot.lane.b32.xlu0 %v598, 15
      %v612 = vpop.permute.xlu0 %611
      %613 = vrot.lane.b32.xlu0 %v602, 15
      %v614 = vpop.permute.xlu0 %613
      %615 = vrot.lane.b32.xlu0 %v606, 15
      %v616 = vpop.permute.xlu0 %615
      %617 = vrot.lane.b32.xlu0 %v610, 15
      %v618 = vpop.permute.xlu0 %617
      %v619 = vsel %vm439, %v612, %v614
      %v620 = vsel %vm439, %v614, %v616
      %v621 = vsel %vm439, %v616, %v618
      %v627 = vmul.f32 %v241, %v612
      %v628 = vmul.f32 %v242, %v619
      %v629 = vmul.f32 %v243, %v620
      %v630 = vmul.f32 %v244, %v621
      %v631 = vmul.f32 %v245, %v618
      %637 = vrot.lane.b32.xlu0 %v627, 113
      %v638 = vpop.permute.xlu0 %637
      %639 = vrot.lane.b32.xlu0 %v628, 113
      %v640 = vpop.permute.xlu0 %639
      %641 = vrot.lane.b32.xlu0 %v629, 113
      %v642 = vpop.permute.xlu0 %641
      %643 = vrot.lane.b32.xlu0 %v630, 113
      %v644 = vpop.permute.xlu0 %643
      %645 = vrot.lane.b32.xlu0 %v631, 113
      %v646 = vpop.permute.xlu0 %645
      %v647 = vsel %vm410, %v638, %v640
      %v648 = vsel %vm410, %v640, %v642
      %v649 = vsel %vm410, %v642, %v644
      %v650 = vsel %vm410, %v644, %v646
      %655 = vst [vmem:[#allocation3 + $0xc0] sm:$0xff] %v647
      %656 = vst [vmem:[#allocation3 + $0xc8] sm:$0xff] %v648
      %657 = vst [vmem:[#allocation3 + $0xd0] sm:$0xff] %v649
      %658 = vst [vmem:[#allocation3 + $0xd8] sm:$0xff] %v650
      %s659 = scalar_lea.vmem %s5, 7
      %v660 = vld [vmem:[%s659] ss:$8 sm:$0xf]
      %v662 = vlaneseq
      %v663 = vshrl.u32 %v662, 7
      %v664 = vsub.s32 0, %v663
      %v665 = vrot.slane %v660, %v664
      %v666 = vlaneseq
      %v667 = vshrl.u32 %v666, 7
      %v668 = vsub.s32 1, %v667
      %v669 = vrot.slane %v660, %v668
      %v670 = vlaneseq
      %v671 = vshrl.u32 %v670, 7
      %v672 = vsub.s32 2, %v671
      %v673 = vrot.slane %v660, %v672
      %v674 = vlaneseq
      %v675 = vshrl.u32 %v674, 7
      %v676 = vsub.s32 3, %v675
      %v677 = vrot.slane %v660, %v676
      %678 = vrot.lane.b32.xlu0 %v665, 16
      %v679 = vpop.permute.xlu0 %678
      %680 = vrot.lane.b32.xlu0 %v669, 16
      %v681 = vpop.permute.xlu0 %680
      %682 = vrot.lane.b32.xlu0 %v673, 16
      %v683 = vpop.permute.xlu0 %682
      %684 = vrot.lane.b32.xlu0 %v677, 16
      %v685 = vpop.permute.xlu0 %684
      %v686 = vsel %vm370, %v679, %v681
      %v687 = vsel %vm370, %v681, %v683
      %v688 = vsel %vm370, %v683, %v685
      %v694 = vmul.f32 %v241, %v679
      %v695 = vmul.f32 %v242, %v686
      %v696 = vmul.f32 %v243, %v687
      %v697 = vmul.f32 %v244, %v688
      %v698 = vmul.f32 %v245, %v685
      %704 = vrot.lane.b32.xlu0 %v694, 112
      %v705 = vpop.permute.xlu0 %704
      %706 = vrot.lane.b32.xlu0 %v695, 112
      %v707 = vpop.permute.xlu0 %706
      %708 = vrot.lane.b32.xlu0 %v696, 112
      %v709 = vpop.permute.xlu0 %708
      %710 = vrot.lane.b32.xlu0 %v697, 112
      %v711 = vpop.permute.xlu0 %710
      %712 = vrot.lane.b32.xlu0 %v698, 112
      %v713 = vpop.permute.xlu0 %712
      %v714 = vsel %vm341, %v705, %v707
      %v715 = vsel %vm341, %v707, %v709
      %v716 = vsel %vm341, %v709, %v711
      %v717 = vsel %vm341, %v711, %v713
      %722 = vst [vmem:[#allocation3 + $0xe0] sm:$0xff] %v714
      %723 = vst [vmem:[#allocation3 + $0xe8] sm:$0xff] %v715
      %724 = vst [vmem:[#allocation3 + $0xf0] sm:$0xff] %v716
      %725 = vst [vmem:[#allocation3 + $0xf8] sm:$0xff] %v717
      %s726 = scalar_lea.vmem %s5, 32
      %v727 = vld [vmem:[%s726] ss:$8 sm:$0xf]
      %v729 = vlaneseq
      %v730 = vshrl.u32 %v729, 7
      %v731 = vsub.s32 0, %v730
      %v732 = vrot.slane %v727, %v731
      %v733 = vlaneseq
      %v734 = vshrl.u32 %v733, 7
      %v735 = vsub.s32 1, %v734
      %v736 = vrot.slane %v727, %v735
      %v737 = vlaneseq
      %v738 = vshrl.u32 %v737, 7
      %v739 = vsub.s32 2, %v738
      %v740 = vrot.slane %v727, %v739
      %v741 = vlaneseq
      %v742 = vshrl.u32 %v741, 7
      %v743 = vsub.s32 3, %v742
      %v744 = vrot.slane %v727, %v743
      %745 = vrot.lane.b32.xlu0 %v732, 17
      %v746 = vpop.permute.xlu0 %745
      %747 = vrot.lane.b32.xlu0 %v736, 17
      %v748 = vpop.permute.xlu0 %747
      %749 = vrot.lane.b32.xlu0 %v740, 17
      %v750 = vpop.permute.xlu0 %749
      %751 = vrot.lane.b32.xlu0 %v744, 17
      %v752 = vpop.permute.xlu0 %751
      %v753 = vsel %vm301, %v746, %v748
      %v754 = vsel %vm301, %v748, %v750
      %v755 = vsel %vm301, %v750, %v752
      %v761 = vmul.f32 %v241, %v746
      %v762 = vmul.f32 %v242, %v753
      %v763 = vmul.f32 %v243, %v754
      %v764 = vmul.f32 %v244, %v755
      %v765 = vmul.f32 %v245, %v752
      %771 = vrot.lane.b32.xlu0 %v761, 111
      %v772 = vpop.permute.xlu0 %771
      %773 = vrot.lane.b32.xlu0 %v762, 111
      %v774 = vpop.permute.xlu0 %773
      %775 = vrot.lane.b32.xlu0 %v763, 111
      %v776 = vpop.permute.xlu0 %775
      %777 = vrot.lane.b32.xlu0 %v764, 111
      %v778 = vpop.permute.xlu0 %777
      %779 = vrot.lane.b32.xlu0 %v765, 111
      %v780 = vpop.permute.xlu0 %779
      %v781 = vsel %vm272, %v772, %v774
      %v782 = vsel %vm272, %v774, %v776
      %v783 = vsel %vm272, %v776, %v778
      %v784 = vsel %vm272, %v778, %v780
      %789 = vst [vmem:[#allocation3 + $0x100] sm:$0xff] %v781
      %790 = vst [vmem:[#allocation3 + $0x108] sm:$0xff] %v782
      %791 = vst [vmem:[#allocation3 + $0x110] sm:$0xff] %v783
      %792 = vst [vmem:[#allocation3 + $0x118] sm:$0xff] %v784
      %v793 = vld [vmem:[%s1] sm:$0xf]
      %v794 = vld [vmem:[#allocation3] sm:$0xff]
      %v795 = vld [vmem:[#allocation3 + $0x8] sm:$0xff]
      %v796 = vld [vmem:[#allocation3 + $0x10] sm:$0xff]
      %v797 = vld [vmem:[#allocation3 + $0x18] sm:$0xff]
      %v798 = vld [vmem:[#allocation3 + $0x20] sm:$0xff]
      %v799 = vld [vmem:[#allocation3 + $0x28] sm:$0xff]
      %v800 = vld [vmem:[#allocation3 + $0x30] sm:$0xff]
      %v801 = vld [vmem:[#allocation3 + $0x38] sm:$0xff]
      %v802 = vld [vmem:[#allocation3 + $0x40] sm:$0xff]
      %v803 = vld [vmem:[#allocation3 + $0x48] sm:$0xff]
      %v804 = vld [vmem:[#allocation3 + $0x50] sm:$0xff]
      %v805 = vld [vmem:[#allocation3 + $0x58] sm:$0xff]
      %v806 = vld [vmem:[#allocation3 + $0x60] sm:$0xff]
      %v807 = vld [vmem:[#allocation3 + $0x68] sm:$0xff]
      %v808 = vld [vmem:[#allocation3 + $0x70] sm:$0xff]
      %v809 = vld [vmem:[#allocation3 + $0x78] sm:$0xff]
      %v810 = vld [vmem:[#allocation3 + $0x80] sm:$0xff]
      %v811 = vld [vmem:[#allocation3 + $0x88] sm:$0xff]
      %v812 = vld [vmem:[#allocation3 + $0x90] sm:$0xff]
      %v813 = vld [vmem:[#allocation3 + $0x98] sm:$0xff]
      %v814 = vld [vmem:[#allocation3 + $0xa0] sm:$0xff]
      %v815 = vld [vmem:[#allocation3 + $0xa8] sm:$0xff]
      %v816 = vld [vmem:[#allocation3 + $0xb0] sm:$0xff]
      %v817 = vld [vmem:[#allocation3 + $0xb8] sm:$0xff]
      %v818 = vld [vmem:[#allocation3 + $0xc0] sm:$0xff]
      %v819 = vld [vmem:[#allocation3 + $0xc8] sm:$0xff]
      %v820 = vld [vmem:[#allocation3 + $0xd0] sm:$0xff]
      %v821 = vld [vmem:[#allocation3 + $0xd8] sm:$0xff]
      %v822 = vld [vmem:[#allocation3 + $0xe0] sm:$0xff]
      %v823 = vld [vmem:[#allocation3 + $0xe8] sm:$0xff]
      %v824 = vld [vmem:[#allocation3 + $0xf0] sm:$0xff]
      %v825 = vld [vmem:[#allocation3 + $0xf8] sm:$0xff]
      %v826 = vld [vmem:[#allocation3 + $0x100] sm:$0xff]
      %v827 = vld [vmem:[#allocation3 + $0x108] sm:$0xff]
      %v828 = vld [vmem:[#allocation3 + $0x110] sm:$0xff]
      %v829 = vld [vmem:[#allocation3 + $0x118] sm:$0xff]
      %v830 = vpack.c.bf16 %v798, %v794
      %v831 = vpack.c.bf16 %v799, %v795
      %v832 = vpack.c.bf16 %v800, %v796
      %v833 = vpack.c.bf16 %v801, %v797
      %v834 = vpack.c.bf16 %v806, %v802
      %v835 = vpack.c.bf16 %v807, %v803
      %v836 = vpack.c.bf16 %v808, %v804
      %v837 = vpack.c.bf16 %v809, %v805
      %v838 = vpack.c.bf16 %v814, %v810
      %v839 = vpack.c.bf16 %v815, %v811
      %v840 = vpack.c.bf16 %v816, %v812
      %v841 = vpack.c.bf16 %v817, %v813
      %v842 = vpack.c.bf16 %v822, %v818
      %v843 = vpack.c.bf16 %v823, %v819
      %v844 = vpack.c.bf16 %v824, %v820
      %v845 = vpack.c.bf16 %v825, %v821
      %v846 = vpack.c.bf16 %v826, %v826
      %v847 = vpack.c.bf16 %v827, %v827
      %v848 = vpack.c.bf16 %v828, %v828
      %v849 = vpack.c.bf16 %v829, %v829
      %v850 = vld [vmem:[%s2] sm:$0xff]
      %852 = vset.pattern.permute.xlu0 0
      %853 = vperm.xlu0 %852, %v850
      %v854 = vpop.permute.xlu0 %853
      %vm856 = vcmask 588800
      %v858 = vsel %vm856, %v793, 0
      %vm860 = vcmask 1043456
      %v862 = vsel %vm860, %v846, 0
      %v865 = vsel %vm860, %v847, 0
      %v868 = vsel %vm860, %v848, 0
      %v871 = vsel %vm860, %v849, 0
      %873 = vmatprep.subr.bf16.mxu0 %v831
      %874 = vmatpush1.bf16.msra.mxu0 %v830
      %875 = vmatprep.subr.bf16.mxu0 %v835
      %876 = vmatpush1.bf16.msra.mxu0 %v834
      %877 = vmatprep.subr.bf16.mxu0 %v839
      %878 = vmatpush1.bf16.msra.mxu0 %v838
      %879 = vmatprep.subr.bf16.mxu0 %v843
      %880 = vmatpush1.bf16.msra.mxu0 %v842
      %881 = vmatprep.subr.bf16.mxu0 %v865
      %882 = vmatpush1.bf16.msra.mxu0 %v862
      %883 = vmatprep.subr.bf16.mxu0 0
      %884 = vmatpush1.bf16.msra.mxu0 0
      %885 = vmatprep.subr.bf16.mxu0 0
      %886 = vmatpush1.bf16.msra.mxu0 0
      %887 = vmatprep.subr.bf16.mxu0 0
      %888 = vmatpush1.bf16.msra.mxu0 0
      %889 = vmatprep.subr.bf16.mxu0 0
      %890 = vmatpush1.bf16.msra.mxu0 0
      %891 = vmatprep.subr.bf16.mxu0 0
      %892 = vmatpush1.bf16.msra.mxu0 0
      %893 = vmatprep.subr.bf16.mxu0 0
      %894 = vmatpush1.bf16.msra.mxu0 0
      %895 = vmatprep.subr.bf16.mxu0 0
      %896 = vmatpush1.bf16.msra.mxu0 0
      %897 = vmatprep.subr.bf16.mxu0 0
      %898 = vmatpush1.bf16.msra.mxu0 0
      %899 = vmatprep.subr.bf16.mxu0 0
      %900 = vmatpush1.bf16.msra.mxu0 0
      %901 = vmatprep.subr.bf16.mxu0 0
      %902 = vmatpush1.bf16.msra.mxu0 0
      %903 = vmatprep.subr.bf16.mxu0 0
      %904 = vmatpush1.bf16.msra.mxu0 0
      %905 = vmatprep.mubr.bf16.mxu0 0
      %906 = vmatmul.mubr.bf16.gmra.mrb[0].mxu0 %v858
      %v907 = vpop.f32.mrb[0].mxu0
      %v908 = vadd.f32 %v854, %v907
      %v909 = vpop.f32.mrb[0].mxu0
      %v910 = vadd.f32 %v854, %v909
      %v911 = vpop.f32.mrb[0].mxu0
      %v912 = vpop.f32.mrb[0].mxu0
      %913 = vdwg.mxu0
      %914 = vmatprep.subr.bf16.mxu0 %v833
      %915 = vmatpush1.bf16.msra.mxu0 %v832
      %916 = vmatprep.subr.bf16.mxu0 %v837
      %917 = vmatpush1.bf16.msra.mxu0 %v836
      %918 = vmatprep.subr.bf16.mxu0 %v841
      %919 = vmatpush1.bf16.msra.mxu0 %v840
      %920 = vmatprep.subr.bf16.mxu0 %v845
      %921 = vmatpush1.bf16.msra.mxu0 %v844
      %922 = vmatprep.subr.bf16.mxu0 %v871
      %923 = vmatpush1.bf16.msra.mxu0 %v868
      %924 = vmatprep.subr.bf16.mxu0 0
      %925 = vmatpush1.bf16.msra.mxu0 0
      %926 = vmatprep.subr.bf16.mxu0 0
      %927 = vmatpush1.bf16.msra.mxu0 0
      %928 = vmatprep.subr.bf16.mxu0 0
      %929 = vmatpush1.bf16.msra.mxu0 0
      %930 = vmatprep.subr.bf16.mxu0 0
      %931 = vmatpush1.bf16.msra.mxu0 0
      %932 = vmatprep.subr.bf16.mxu0 0
      %933 = vmatpush1.bf16.msra.mxu0 0
      %934 = vmatprep.subr.bf16.mxu0 0
      %935 = vmatpush1.bf16.msra.mxu0 0
      %936 = vmatprep.subr.bf16.mxu0 0
      %937 = vmatpush1.bf16.msra.mxu0 0
      %938 = vmatprep.subr.bf16.mxu0 0
      %939 = vmatpush1.bf16.msra.mxu0 0
      %940 = vmatprep.subr.bf16.mxu0 0
      %941 = vmatpush1.bf16.msra.mxu0 0
      %942 = vmatprep.subr.bf16.mxu0 0
      %943 = vmatpush1.bf16.msra.mxu0 0
      %944 = vmatprep.subr.bf16.mxu0 0
      %945 = vmatpush1.bf16.msra.mxu0 0
      %946 = vmatprep.mubr.bf16.mxu0 0
      %947 = vmatmul.mubr.bf16.gmra.mrb[0].mxu0 %v858
      %v948 = vpop.f32.mrb[0].mxu0
      %v949 = vadd.f32 %v854, %v948
      %v950 = vpop.f32.mrb[0].mxu0
      %v951 = vadd.f32 %v854, %v950
      %v952 = vpop.f32.mrb[0].mxu0
      %v953 = vpop.f32.mrb[0].mxu0
      %954 = vdwg.mxu0
      %v955 = vadd.f32 %v908, %v910
      %v956 = vadd.f32 %v955, %v949
      %v957 = vadd.f32 %v956, %v951
      %958 = vadd.xlane.f32.xlu0 %v957
      %v959 = vpop.xlane.xlu0 %958
      %v960 = vrcp.pop 512.0
      %v961 = vmul.f32 %v959, %v960
      %v962 = vsub.f32 %v908, %v961
      %v963 = vsub.f32 %v910, %v961
      %v964 = vsub.f32 %v949, %v961
      %v965 = vsub.f32 %v951, %v961
      %v966 = vmul.f32 %v962, %v962
      %v967 = vmul.f32 %v963, %v963
      %v968 = vmul.f32 %v964, %v964
      %v969 = vmul.f32 %v965, %v965
      %v970 = vadd.f32 %v966, %v967
      %v971 = vadd.f32 %v970, %v968
      %v972 = vadd.f32 %v971, %v969
      %973 = vadd.xlane.f32.xlu0 %v972
      %v974 = vpop.xlane.xlu0 %973
      %v975 = vmul.f32 %v974, %v960
      %v976 = vld [vmem:[%s3] sm:$0xff]
      %v977 = vadd.f32 %v975, 1e-05
      %v978 = vrsqrt.pop %v977
      %v979 = vmul.f32 %v976, %v978
      %981 = vset.pattern.permute.xlu0 0
      %982 = vperm.xlu0 %981, %v979
      %v983 = vpop.permute.xlu0 %982
      %v985 = vmul.f32 %v962, %v983
      %v986 = vmul.f32 %v963, %v983
      %v987 = vmul.f32 %v964, %v983
      %v988 = vmul.f32 %v965, %v983
      %v989 = vld [vmem:[%s4] sm:$0xff]
      %991 = vset.pattern.permute.xlu0 0
      %992 = vperm.xlu0 %991, %v989
      %v993 = vpop.permute.xlu0 %992
      %v995 = vadd.f32 %v985, %v993
      %v996 = vadd.f32 %v986, %v993
      %v997 = vadd.f32 %v987, %v993
      %v998 = vadd.f32 %v988, %v993
      %v999 = vmax.f32 %v995, 0.0
      %v1000 = vmax.f32 %v996, 0.0
      %v1001 = vmax.f32 %v997, 0.0
      %v1002 = vmax.f32 %v998, 0.0
      %1003 = vst [vmem:[#allocation2 + $0x8] sm:$0xff] %v999
      %1004 = vst [vmem:[#allocation2 + $0x10] sm:$0xff] %v1000
      %1005 = vst [vmem:[#allocation2 + $0x18] sm:$0xff] %v1001
      %1006 = vst [vmem:[#allocation2 + $0x20] sm:$0xff] %v1002
      %1007 = vst [vmem:[%s6] sm:$0xff] %v999
      %1008 = vst [vmem:[%s6 + $0x8] sm:$0xff] %v1000
      %1009 = vst [vmem:[%s6 + $0x10] sm:$0xff] %v1001
      %1010 = vst [vmem:[%s6 + $0x18] sm:$0xff] %v1002
      // Predicated region
      $region49: #{recurrent_block_forward.1} parent=43 // pred_check
        %p1011 = pneg %p156
      $region50: #{recurrent_block_forward.1} parent=43 // pred_check_branch
        %1013 = sbr.rel (%p1011) target = $region52
      $region51: #{recurrent_block_forward.1} parent=43 // pred_region
        _
      $region52: #{recurrent_block_forward.1} parent=43 // pred_fallthru
        _
      // Predicated region
      $region53: #{recurrent_block_forward.1} parent=43 // pred_check
        %p1014 = pneg %p156
      $region54: #{recurrent_block_forward.1} parent=43 // pred_check_branch
        %1016 = sbr.rel (%p1014) target = $region56
      $region55: #{recurrent_block_forward.1} parent=43 // pred_region
        _
      $region56: #{recurrent_block_forward.1} parent=43 // pred_fallthru
        _
    $region44: #{recurrent_block_forward.1} parent=5 // pred_fallthru
      _
    %p1017 = scmp.le.s32.totalorder 2, %s12
    // Predicated region
    $region57: #{recurrent_block_forward.1} parent=5 // pred_check
      %p1018 = pneg %p1017
    $region58: #{recurrent_block_forward.1} parent=5 // pred_check_branch
      %1020 = sbr.rel (%p1018) target = $region60
    $region59: #{recurrent_block_forward.1} parent=5 // pred_region
      %s1021 = ssub.s32 %s12, 2
    $region60: #{recurrent_block_forward.1} parent=5 // pred_fallthru
      _
  $region6: #{recurrent_block_forward.1} parent=0 // loop_footer
    %s16 = sadd.s32 1, %s12
  $region7: #{recurrent_block_forward.1} parent=0 // loop_footer_branch
    %11 = sbr.rel target = $region3
  $region8: #{recurrent_block_forward.1} parent=0 // loop_exit
    _

</llo_original>
